<compile_context>
chip_gen: v6e
topology: v6e:2x2x1
jax: 0.10.0
libtpu: 0.0.40
codegen_flags: <defaults>
</compile_context>

<pallas_src>
import functools

import jax
import jax.numpy as jnp
from jax.experimental import pallas as pl
from jax.experimental.pallas import tpu as pltpu


def _round_up(x: int, m: int) -> int:
    return (x + m - 1) // m * m


# -----------------------------------------------------------------------------
# Pallas kernel: one grid step = (view v, hop index hi, output row block i).
# -----------------------------------------------------------------------------
def _dimpa_kernel(w_ref, p_ref, x_ref, out_ref, curr_ref, *, ti):
    # w_ref   : SMEM (2, hop+1) f32   scalar-prefetched hop weights (row 0: w_s, row 1: w_t)
    # p_ref   : VMEM (ti, Np)         contiguous row stripe i of view v's propagation matrix
    # x_ref   : VMEM (Np, Dp) f32     full padded features of view v (resident per view)
    # out_ref : VMEM (Np, Dp) f32     resident per-view feature accumulator (feat)
    # curr_ref: VMEM (2, Np, Dp) f32  ping-pong buffers for curr^h
    #
    # CORRECTNESS NOTE: the row-block axis `i` MUST stay the innermost,
    # sequential ("arbitrary") grid axis and `hi` must precede it.  Hop hi >= 1
    # reads the FULL curr^{hi} written block-by-block during hop hi-1, and the
    # resident out block accumulates across every (hi, i) step of one view.
    # Re-gridding (e.g. making i parallel) silently breaks both assumptions.
    v = pl.program_id(0)
    hi = pl.program_id(1)            # hop h = hi + 1
    i = pl.program_id(2)

    row0 = pl.multiple_of(i * ti, ti)
    old = (hi + 1) % 2               # slot holding curr^{hi}   (valid for hi >= 1)
    new = hi % 2                     # slot receiving curr^{hi+1}

    # Upcast the (possibly bf16) P stripe to f32 on the VPU (hidden under the
    # stripe DMA) so the recurrence state curr stays f32 across hops.
    lhs = p_ref[...].astype(jnp.float32)
    w_h = w_ref[v, hi + 1]

    def hop_block(rhs):
        # curr^{h}[rows i] = P[rows i, :] @ curr^{h-1};  feat[rows i] += w[h] * it
        res = jnp.dot(lhs, rhs, preferred_element_type=jnp.float32)
        curr_ref[new, pl.ds(row0, ti), :] = res
        out_ref[pl.ds(row0, ti), :] += w_h * res

    @pl.when(hi == 0)
    def _():
        # Hop 1: seed feat rows with w[0] * x, then use x directly as the RHS
        # (curr^0 = x never has to be materialized in scratch).
        out_ref[pl.ds(row0, ti), :] = w_ref[v, 0] * x_ref[pl.ds(row0, ti), :]
        hop_block(x_ref[...])

    @pl.when(hi > 0)
    def _():
        hop_block(curr_ref[old])


def dimpa_pallas(w_all, p_all, x_all, hop):
    """w_all: (2, hop+1) f32; p_all: (2, Np, Np) padded f32/bf16; x_all: (2, Np, Dp) f32 padded."""
    assert hop >= 1
    _, np_, dp = x_all.shape
    assert p_all.shape == (2, np_, np_)
    assert np_ % 128 == 0 and dp % 128 == 0
    p_itemsize = jnp.dtype(p_all.dtype).itemsize

    # Per-chip VMEM capacity: 128 MiB on v5e/v6e, 64 MiB per TC on v7x.
    try:
        vmem_cap = int(pltpu.get_tpu_info().vmem_capacity_bytes)
    except Exception:
        vmem_cap = 64 * 1024 * 1024            # safe fallback on every generation
    max_cap = max(32 * 1024 * 1024, vmem_cap - 16 * 1024 * 1024)  # compiler headroom

    # Residents: x (pipeline-buffered across views), out block, curr ping-pong.
    # TODO(synk): request pl.Buffered(1) for the resident x/out blocks once
    # single-buffered revisited blocks are verified; reclaims ~2*Np*Dp*4 bytes.
    resident_bytes = 6 * np_ * dp * 4
    headroom = 4 * 1024 * 1024

    # Row-stripe height: largest multiple of 128 dividing Np whose
    # double-buffered (ti, Np) stripe fits the remaining VMEM budget.
    stripe_budget = max(2 * 128 * np_ * p_itemsize,
                        max_cap - resident_bytes - headroom)
    ti = 128
    for cand in (1024, 896, 768, 640, 512, 384, 256, 128):
        if cand <= np_ and np_ % cand == 0 and 2 * cand * np_ * p_itemsize <= stripe_budget:
            ti = cand
            break
    nk = np_ // ti

    needed = resident_bytes + 2 * ti * np_ * p_itemsize + 2 * ti * dp * 4
    vmem_limit = int(min(max_cap, max(16 * 1024 * 1024, needed + 8 * 1024 * 1024)))

    cost = pl.CostEstimate(
        flops=int(2 * hop * 2 * np_ * np_ * dp),
        transcendentals=0,
        bytes_accessed=int(2 * hop * np_ * np_ * p_itemsize + 4 * np_ * dp * 4),
    )

    grid_spec = pltpu.PrefetchScalarGridSpec(
        num_scalar_prefetch=1,                    # hop weights land in SMEM
        grid=(2, hop, nk),
        in_specs=[
            # Contiguous row stripe i of view v's propagation matrix (streamed,
            # auto double-buffered HBM->VMEM DMA overlapped with the MXU).
            pl.BlockSpec((None, ti, np_), lambda v, hi, i, w: (v, i, 0)),
            # Full padded features of view v: block index is constant across
            # (hi, i) -> DMA'd once per view, no redundant refetch.
            pl.BlockSpec((None, np_, dp), lambda v, hi, i, w: (v, 0, 0)),
        ],
        out_specs=pl.BlockSpec((None, np_, dp), lambda v, hi, i, w: (v, 0, 0)),
        scratch_shapes=[pltpu.VMEM((2, np_, dp), jnp.float32)],
    )

    out = pl.pallas_call(
        functools.partial(_dimpa_kernel, ti=ti),
        out_shape=jax.ShapeDtypeStruct((2, np_, dp), jnp.float32),
        grid_spec=grid_spec,
        compiler_params=pltpu.CompilerParams(
            # Views are independent -> "parallel" (v7x megacore: one view per
            # TensorCore); hop/row-block carry the recurrence -> "arbitrary".
            dimension_semantics=("parallel", "arbitrary", "arbitrary"),
            vmem_limit_bytes=vmem_limit,
        ),
        cost_estimate=cost,
    )(w_all.astype(jnp.float32), p_all, x_all)
    return out


# -----------------------------------------------------------------------------
# Plain-JAX glue: densify the graph and build normalized propagation matrices,
# directly padded to (Np, Np) and in their final storage dtype (no extra O(N^2)
# pad/cast pass over HBM before the kernel).
# (Mirrors torch Conv_Base: self-loops with fill_value, out-degree row norm,
#  source->target aggregation. Duplicate edges are coalesced by summation,
#  matching scatter-add semantics.)
# -----------------------------------------------------------------------------
def _build_propagation_matrices(edge_index, edge_weight, num_nodes, n_pad,
                                fill_value, p_dtype):
    src, dst = edge_index[0], edge_index[1]
    w = edge_weight.astype(jnp.float32)
    adj = jnp.zeros((n_pad, n_pad), jnp.float32).at[src, dst].add(w)
    loop = jnp.arange(num_nodes)

    def norm_prop(a):
        a_hat = a.at[loop, loop].add(fill_value)      # self-loops on real nodes only
        deg = a_hat.sum(axis=1)                       # out-degree of source rows
        deg_inv = jnp.where(deg > 0, 1.0 / deg, 0.0)  # padded/isolated rows -> 0
        # out = (D^{-1} A_hat)^T @ x  ->  P = A_hat^T * deg_inv[None, :]
        return (a_hat.T * deg_inv[None, :]).astype(p_dtype)

    p_s = norm_prop(adj)     # source view uses edge_index
    p_t = norm_prop(adj.T)   # target view uses edge_index[[1, 0]]
    return jnp.stack([p_s, p_t])


def dimpa_forward(x_s, x_t, edge_index, edge_weight, w_s, w_t, hop,
                  fill_value=0.5, p_dtype=jnp.bfloat16):
    """bf16-stored P by default (bandwidth-bound kernel); p_dtype=f32 is the debug path."""
    n, d = x_s.shape
    np_ = _round_up(n, 128)                      # node dim padded for tiling
    dp = _round_up(d, 128)                       # lane-dense feature dim
    p_all = _build_propagation_matrices(edge_index, edge_weight, n, np_,
                                        fill_value, p_dtype)
    x_all = jnp.zeros((2, np_, dp), jnp.float32)
    x_all = x_all.at[0, :n, :d].set(x_s.astype(jnp.float32))
    x_all = x_all.at[1, :n, :d].set(x_t.astype(jnp.float32))
    w_all = jnp.stack([w_s.reshape(-1), w_t.reshape(-1)]).astype(jnp.float32)
    out = dimpa_pallas(w_all, p_all, x_all, hop)
    # Un-pad and concatenate the source/target halves (wrapper-side, cheap).
    return jnp.concatenate([out[0, :n, :d], out[1, :n, :d]], axis=1)


# -----------------------------------------------------------------------------
# Pure-JAX reference (mirrors the torch forward) for correctness checking.
# -----------------------------------------------------------------------------
def dimpa_reference(x_s, x_t, edge_index, edge_weight, w_s, w_t, hop, fill_value=0.5):
    n = x_s.shape[0]
    p = _build_propagation_matrices(edge_index, edge_weight, n, n,
                                    fill_value, jnp.float32)
    p_s, p_t = p[0], p[1]
    w_s = w_s.reshape(-1)
    w_t = w_t.reshape(-1)
    feat_s = w_s[0] * x_s
    feat_t = w_t[0] * x_t
    curr_s, curr_t = x_s, x_t
    for h in range(1, hop + 1):
        curr_s = p_s @ curr_s
        curr_t = p_t @ curr_t
        feat_s = feat_s + w_s[h] * curr_s
        feat_t = feat_t + w_t[h] * curr_t
    return jnp.concatenate([feat_s, feat_t], axis=1)


if __name__ == "__main__":
    key = jax.random.PRNGKey(0)
    k1, k2, k3, k4 = jax.random.split(key, 4)

    num_nodes = 64
    in_dim = 32
    num_edges = 256
    hop = 2
    fill_value = 0.5

    x_s = jax.random.normal(k1, (num_nodes, in_dim), dtype=jnp.float32)
    x_t = jax.random.normal(k2, (num_nodes, in_dim), dtype=jnp.float32)
    edge_index = jax.random.randint(k3, (2, num_edges), 0, num_nodes, dtype=jnp.int32)
    edge_weight = jax.random.uniform(k4, (num_edges,), dtype=jnp.float32) + 0.1

    # Parameters: module fills both with 1.0 (shape (hop+1, 1)).
    w_s = jnp.ones((hop + 1, 1), dtype=jnp.float32)
    w_t = jnp.ones((hop + 1, 1), dtype=jnp.float32)

    ref = dimpa_reference(x_s, x_t, edge_index, edge_weight, w_s, w_t, hop, fill_value)

    # Default (bandwidth-optimized) path: bf16-stored P, f32 curr -> loose check.
    out_bf16 = dimpa_forward(x_s, x_t, edge_index, edge_weight, w_s, w_t, hop,
                             fill_value)  # p_dtype defaults to bfloat16
    out_bf16 = jax.block_until_ready(out_bf16)
    assert out_bf16.shape == (num_nodes, 2 * in_dim)
    assert bool(jnp.all(jnp.isfinite(out_bf16)))
    assert float(jnp.max(jnp.abs(out_bf16 - ref))) < 0.1, \
        float(jnp.max(jnp.abs(out_bf16 - ref)))

    # f32 propagation matrices (debug path): tight check against the reference.
    out_f32 = dimpa_forward(x_s, x_t, edge_index, edge_weight, w_s, w_t, hop,
                            fill_value, p_dtype=jnp.float32)
    out_f32 = jax.block_until_ready(out_f32)
    assert out_f32.shape == (num_nodes, 2 * in_dim)
    assert jnp.allclose(out_f32, ref, atol=1e-4, rtol=1e-4), \
        float(jnp.abs(out_f32 - ref).max())

    print("KERNEL_OK")
</pallas_src>

<mosaic_0001>
module attributes {stable_mosaic.version = 11 : i64} {
  func.func @_dimpa_kernel(%arg0: i32, %arg1: i32, %arg2: i32, %arg3: memref<2x3xf32, #tpu.memory_space<smem>>, %arg4: memref<1x128x128xbf16, #tpu.memory_space<vmem>>, %arg5: memref<1x128x128xf32, #tpu.memory_space<vmem>>, %arg6: memref<1x128x128xf32, #tpu.memory_space<vmem>>, %arg7: memref<2x128x128xf32, #tpu.memory_space<vmem>>) attributes {dimension_semantics = [#tpu.dimension_semantics<parallel>, #tpu.dimension_semantics<arbitrary>, #tpu.dimension_semantics<arbitrary>], iteration_bounds = array<i64: 2, 2, 1>, scalar_prefetch = 1 : i64, scratch_operands = 1 : i64, tpu.core_type = #tpu.core_type<tc>, window_params = [{transform_indices = @transform_0, window_bounds = array<i64: 1, 128, 128>}, {transform_indices = @transform_1, window_bounds = array<i64: 1, 128, 128>}, {transform_indices = @transform_2, window_bounds = array<i64: 1, 128, 128>}]} {
    %c128_i32 = arith.constant 128 : i32
    %0 = arith.muli %arg2, %c128_i32 : i32
    %1 = tpu.assume_multiple %0, 128 : i32
    %c1_i32 = arith.constant 1 : i32
    %2 = arith.addi %arg1, %c1_i32 : i32
    %c2_i32 = arith.constant 2 : i32
    %c0_i32 = arith.constant 0 : i32
    %3 = arith.cmpi eq, %c2_i32, %c0_i32 : i32
    %c1_i32_0 = arith.constant 1 : i32
    %4 = arith.select %3, %c1_i32_0, %c2_i32 : i32
    %5 = arith.remsi %2, %4 : i32
    %c0_i32_1 = arith.constant 0 : i32
    %6 = arith.cmpi ne, %5, %c0_i32_1 : i32
    %c0_i32_2 = arith.constant 0 : i32
    %7 = arith.cmpi slt, %5, %c0_i32_2 : i32
    %c0_i32_3 = arith.constant 0 : i32
    %8 = arith.cmpi slt, %4, %c0_i32_3 : i32
    %9 = arith.xori %7, %8 : i1
    %10 = arith.andi %9, %6 : i1
    %11 = arith.addi %5, %4 : i32
    %12 = arith.select %10, %11, %5 : i32
    %c2_i32_4 = arith.constant 2 : i32
    %c0_i32_5 = arith.constant 0 : i32
    %13 = arith.cmpi eq, %c2_i32_4, %c0_i32_5 : i32
    %c1_i32_6 = arith.constant 1 : i32
    %14 = arith.select %13, %c1_i32_6, %c2_i32_4 : i32
    %15 = arith.remsi %arg1, %14 : i32
    %c0_i32_7 = arith.constant 0 : i32
    %16 = arith.cmpi ne, %15, %c0_i32_7 : i32
    %c0_i32_8 = arith.constant 0 : i32
    %17 = arith.cmpi slt, %15, %c0_i32_8 : i32
    %c0_i32_9 = arith.constant 0 : i32
    %18 = arith.cmpi slt, %14, %c0_i32_9 : i32
    %19 = arith.xori %17, %18 : i1
    %20 = arith.andi %19, %16 : i1
    %21 = arith.addi %15, %14 : i32
    %22 = arith.select %20, %21, %15 : i32
    %c0 = arith.constant 0 : index
    %c0_10 = arith.constant 0 : index
    %c0_11 = arith.constant 0 : index
    %23 = vector.load %arg4[%c0, %c0_10, %c0_11] : memref<1x128x128xbf16, #tpu.memory_space<vmem>>, vector<1x128x128xbf16>
    %24 = vector.shape_cast %23 : vector<1x128x128xbf16> to vector<128x128xbf16>
    %25 = arith.extf %24 : vector<128x128xbf16> to vector<128x128xf32>
    %c1_i32_12 = arith.constant 1 : i32
    %26 = arith.addi %arg1, %c1_i32_12 : i32
    %27 = arith.index_cast %arg0 : i32 to index
    %28 = arith.index_cast %26 : i32 to index
    %29 = memref.load %arg3[%27, %28] : memref<2x3xf32, #tpu.memory_space<smem>>
    %c0_i32_13 = arith.constant 0 : i32
    %30 = arith.cmpi eq, %arg1, %c0_i32_13 : i32
    %31 = arith.extui %30 : i1 to i32
    %c0_i32_14 = arith.constant 0 : i32
    %32 = arith.cmpi ne, %31, %c0_i32_14 : i32
    scf.if %32 {
      %36 = arith.index_cast %arg0 : i32 to index
      %c0_17 = arith.constant 0 : index
      %37 = memref.load %arg3[%36, %c0_17] : memref<2x3xf32, #tpu.memory_space<smem>>
      %c0_18 = arith.constant 0 : index
      %38 = arith.index_cast %1 : i32 to index
      %c0_19 = arith.constant 0 : index
      %39 = vector.load %arg5[%c0_18, %38, %c0_19] : memref<1x128x128xf32, #tpu.memory_space<vmem>>, vector<1x128x128xf32>
      %40 = vector.shape_cast %39 : vector<1x128x128xf32> to vector<128x128xf32>
      %41 = vector.broadcast %37 : f32 to vector<128x128xf32>
      %42 = arith.mulf %41, %40 : vector<128x128xf32>
      %c0_20 = arith.constant 0 : index
      %43 = arith.index_cast %1 : i32 to index
      %c0_21 = arith.constant 0 : index
      %44 = vector.load %arg6[%c0_20, %43, %c0_21] : memref<1x128x128xf32, #tpu.memory_space<vmem>>, vector<1x128x128xf32>
      %45 = vector.shape_cast %44 : vector<1x128x128xf32> to vector<128x128xf32>
      %46 = vector.shape_cast %42 : vector<128x128xf32> to vector<1x128x128xf32>
      tpu.vector_store %arg6[%c0_20, %43, %c0_21], %46 {strides = array<i32>} : memref<1x128x128xf32, #tpu.memory_space<vmem>>, vector<1x128x128xf32>,
      %c0_22 = arith.constant 0 : index
      %c0_23 = arith.constant 0 : index
      %c0_24 = arith.constant 0 : index
      %47 = vector.load %arg5[%c0_22, %c0_23, %c0_24] : memref<1x128x128xf32, #tpu.memory_space<vmem>>, vector<1x128x128xf32>
      %48 = vector.shape_cast %47 : vector<1x128x128xf32> to vector<128x128xf32>
      %cst = arith.constant dense<0.000000e+00> : vector<128x128xf32>
      %49 = tpu.matmul %25, %48, %cst {dimension_numbers = #tpu.dot_dimension_numbers<[1], [0], [0], [1], [0, 0, 1, 1], [], []>} : vector<128x128xf32>, vector<128x128xf32>, vector<128x128xf32> -> vector<128x128xf32>
      %50 = arith.index_cast %22 : i32 to index
      %51 = arith.index_cast %1 : i32 to index
      %c0_25 = arith.constant 0 : index
      %52 = vector.load %arg7[%50, %51, %c0_25] : memref<2x128x128xf32, #tpu.memory_space<vmem>>, vector<1x128x128xf32>
      %53 = vector.shape_cast %52 : vector<1x128x128xf32> to vector<128x128xf32>
      %54 = vector.shape_cast %49 : vector<128x128xf32> to vector<1x128x128xf32>
      tpu.vector_store %arg7[%50, %51, %c0_25], %54 {strides = array<i32>} : memref<2x128x128xf32, #tpu.memory_space<vmem>>, vector<1x128x128xf32>,
      %c0_26 = arith.constant 0 : index
      %55 = arith.index_cast %1 : i32 to index
      %c0_27 = arith.constant 0 : index
      %56 = vector.load %arg6[%c0_26, %55, %c0_27] : memref<1x128x128xf32, #tpu.memory_space<vmem>>, vector<1x128x128xf32>
      %57 = vector.shape_cast %56 : vector<1x128x128xf32> to vector<128x128xf32>
      %58 = vector.broadcast %29 : f32 to vector<128x128xf32>
      %59 = arith.mulf %58, %49 : vector<128x128xf32>
      %60 = arith.addf %57, %59 : vector<128x128xf32>
      %c0_28 = arith.constant 0 : index
      %61 = arith.index_cast %1 : i32 to index
      %c0_29 = arith.constant 0 : index
      %62 = vector.load %arg6[%c0_28, %61, %c0_29] : memref<1x128x128xf32, #tpu.memory_space<vmem>>, vector<1x128x128xf32>
      %63 = vector.shape_cast %62 : vector<1x128x128xf32> to vector<128x128xf32>
      %64 = vector.shape_cast %60 : vector<128x128xf32> to vector<1x128x128xf32>
      tpu.vector_store %arg6[%c0_28, %61, %c0_29], %64 {strides = array<i32>} : memref<1x128x128xf32, #tpu.memory_space<vmem>>, vector<1x128x128xf32>,
    } else {
    }
    %c0_i32_15 = arith.constant 0 : i32
    %33 = arith.cmpi sgt, %arg1, %c0_i32_15 : i32
    %34 = arith.extui %33 : i1 to i32
    %c0_i32_16 = arith.constant 0 : i32
    %35 = arith.cmpi ne, %34, %c0_i32_16 : i32
    scf.if %35 {
      %36 = arith.index_cast %12 : i32 to index
      %c0_17 = arith.constant 0 : index
      %c0_18 = arith.constant 0 : index
      %37 = vector.load %arg7[%36, %c0_17, %c0_18] : memref<2x128x128xf32, #tpu.memory_space<vmem>>, vector<1x128x128xf32>
      %38 = vector.shape_cast %37 : vector<1x128x128xf32> to vector<128x128xf32>
      %cst = arith.constant dense<0.000000e+00> : vector<128x128xf32>
      %39 = tpu.matmul %25, %38, %cst {dimension_numbers = #tpu.dot_dimension_numbers<[1], [0], [0], [1], [0, 0, 1, 1], [], []>} : vector<128x128xf32>, vector<128x128xf32>, vector<128x128xf32> -> vector<128x128xf32>
      %40 = arith.index_cast %22 : i32 to index
      %41 = arith.index_cast %1 : i32 to index
      %c0_19 = arith.constant 0 : index
      %42 = vector.load %arg7[%40, %41, %c0_19] : memref<2x128x128xf32, #tpu.memory_space<vmem>>, vector<1x128x128xf32>
      %43 = vector.shape_cast %42 : vector<1x128x128xf32> to vector<128x128xf32>
      %44 = vector.shape_cast %39 : vector<128x128xf32> to vector<1x128x128xf32>
      tpu.vector_store %arg7[%40, %41, %c0_19], %44 {strides = array<i32>} : memref<2x128x128xf32, #tpu.memory_space<vmem>>, vector<1x128x128xf32>,
      %c0_20 = arith.constant 0 : index
      %45 = arith.index_cast %1 : i32 to index
      %c0_21 = arith.constant 0 : index
      %46 = vector.load %arg6[%c0_20, %45, %c0_21] : memref<1x128x128xf32, #tpu.memory_space<vmem>>, vector<1x128x128xf32>
      %47 = vector.shape_cast %46 : vector<1x128x128xf32> to vector<128x128xf32>
      %48 = vector.broadcast %29 : f32 to vector<128x128xf32>
      %49 = arith.mulf %48, %39 : vector<128x128xf32>
      %50 = arith.addf %47, %49 : vector<128x128xf32>
      %c0_22 = arith.constant 0 : index
      %51 = arith.index_cast %1 : i32 to index
      %c0_23 = arith.constant 0 : index
      %52 = vector.load %arg6[%c0_22, %51, %c0_23] : memref<1x128x128xf32, #tpu.memory_space<vmem>>, vector<1x128x128xf32>
      %53 = vector.shape_cast %52 : vector<1x128x128xf32> to vector<128x128xf32>
      %54 = vector.shape_cast %50 : vector<128x128xf32> to vector<1x128x128xf32>
      tpu.vector_store %arg6[%c0_22, %51, %c0_23], %54 {strides = array<i32>} : memref<1x128x128xf32, #tpu.memory_space<vmem>>, vector<1x128x128xf32>,
    } else {
    }
    return
  }
  func.func @transform_0(%arg0: i32, %arg1: i32, %arg2: i32, %arg3: memref<2x3xf32, #tpu.memory_space<smem>>) -> (i32, i32, i32) {
    %c0_i32 = arith.constant 0 : i32
    %c0_i32_0 = arith.constant 0 : i32
    return %arg0, %arg2, %c0_i32 : i32, i32, i32
  }
  func.func @transform_1(%arg0: i32, %arg1: i32, %arg2: i32, %arg3: memref<2x3xf32, #tpu.memory_space<smem>>) -> (i32, i32, i32) {
    %c0_i32 = arith.constant 0 : i32
    %c0_i32_0 = arith.constant 0 : i32
    %c0_i32_1 = arith.constant 0 : i32
    return %arg0, %c0_i32, %c0_i32_0 : i32, i32, i32
  }
  func.func @transform_2(%arg0: i32, %arg1: i32, %arg2: i32, %arg3: memref<2x3xf32, #tpu.memory_space<smem>>) -> (i32, i32, i32) {
    %c0_i32 = arith.constant 0 : i32
    %c0_i32_0 = arith.constant 0 : i32
    %c0_i32_1 = arith.constant 0 : i32
    return %arg0, %c0_i32, %c0_i32_0 : i32, i32, i32
  }
}

</mosaic_0001>

<llo_original>
// kernel: tpu_custom_call.1
$region0: #{tpu_custom_call.1}
  #allocation0 [shape = 'u32[]', space=smem, size = 0x4, offset = 0x4, fixed_abs, tag = 'smem constant byte address 0x4 - core index']
  #allocation1 [shape = 'u32[144,128]{1,0:T(1,128)}', space=vmem, size = 0x12000, scoped, tag = 'internal scratch']
  #allocation2 [shape = 'f32[2,128,128]{2,1,0:T(8,128)}', space=vmem, size = 0x20000, scoped, tag = 'scratch operand']
  #allocation3 [shape = 's32[1]{0}', space=sflag, size = 0x4, scoped, tag = 'scoped memory for tpu_custom_call.1']
  #allocation4 [shape = 'u8[1024]{0}', space=smem, size = 0x400, scoped, tag = 'prefetched SMEM operand 0']
  %s0 = inlined_call_operand.hbm [shape: f32[2,3], index: 0, kind: input, shape index: {}]
  %s1 = inlined_call_operand.hbm [shape: bf16[2,128,128], index: 1, kind: input, shape index: {}]
  %s2 = inlined_call_operand.hbm [shape: f32[2,128,128], index: 2, kind: input, shape index: {}]
  %s3 = inlined_call_operand.hbm [shape: f32[2,128,128], index: 3, kind: output, shape index: {}]
  %s4 = sld [smem:[#allocation0]]
  $region57: #{tpu_custom_call.1} parent=0
    _
  %s6 = ssub.s32 1, %s4
  %s7 = scalar_select 0, %s6, %s4
  %9 = dma.hbm_to_smem %s0, 32, [#allocation4], [#allocation3]
  %10 = dma.done [#allocation3], 32
  %11 = sfence
  $region1: #{tpu_custom_call.1} parent=0
    #allocation5 [shape = 'u8[65536]{0}', space=vmem, size = 0x10000, scoped, tag = 'input window, operand 1']
    #allocation6 [shape = 's32[2]{0}', space=sflag, size = 0x8, scoped, tag = 'scoped memory for tpu_custom_call.1']
    #allocation7 [shape = 's32[2]{0}', space=sflag, size = 0x8, scoped, tag = 'scoped memory for tpu_custom_call.1']
    #allocation8 [shape = 'u8[131072]{0}', space=vmem, size = 0x20000, scoped, tag = 'input window, operand 2']
    #allocation9 [shape = 's32[2]{0}', space=sflag, size = 0x8, scoped, tag = 'scoped memory for tpu_custom_call.1']
    #allocation10 [shape = 'u8[131072]{0}', space=vmem, size = 0x20000, scoped, tag = 'output window, operand 0']
    %12 = vsyncpa [#allocation6], 0
    %s13 = scalar_lea.sflag [#allocation6], 1
    %14 = vsyncpa %s13, 0
    %15 = vsyncpa [#allocation9], 0
    %s16 = scalar_lea.sflag [#allocation9], 1
    %17 = vsyncpa %s16, 0
    %18 = vsyncpa [#allocation7], 0
    %s19 = scalar_lea.sflag [#allocation7], 1
    %20 = vsyncpa %s19, 0
    loop: start=0, step=1, limit=6
    $region2: #{tpu_custom_call.1} parent=1 // loop_pre_header
      _
    $region3: #{tpu_custom_call.1} parent=1 // loop_header
      %s22 = sphi 0, %s26
      %p23 = scmp.ge.s32.totalorder %s22, 6
      %s29 = sphi 0, %s48
      %s30 = sphi 0, %s44
      %s31 = sphi 0, %s40
      %s32 = sphi 0, %s29
      %s33 = sphi 0, %s30
      %s34 = sphi 0, %s31
      %s35 = sphi 0, %s32
      %s36 = sphi 0, %s33
      %s37 = sphi 0, %s34
      %s53 = sphi 0, %s55
      %s56 = sphi 0, %s53
      %s57 = sphi 0, %s56
      %s73 = sphi 0, %s57
      %s79 = sphi 0, %s81
      %s82 = sphi 0, %s79
      %s83 = sphi 0, %s82
      %s99 = sphi 0, %s83
      %s105 = sphi 0, %s107
      %s108 = sphi 0, %s105
      %s109 = sphi 0, %s108
      %s125 = sphi 0, %s109
    $region4: #{tpu_custom_call.1} parent=1 // loop_header_branch
      %25 = sbr.rel (%p23) target = $region8
    $region5: #{tpu_custom_call.1} parent=1 // loop_body
      %s27 = ssub.s32 %s22, 1
      %s28 = ssub.s32 %s22, 2
      %s38 = sadd.s32 1, %s31
      %p39 = scmp.ge.s32.totalorder %s38, 1
      %s40 = scalar_select %p39, 0, %s38
      %s41 = sadd.s32 1, %s30
      %s42 = scalar_select %p39, %s41, %s30
      %p43 = scmp.ge.s32.totalorder %s42, 2
      %s44 = scalar_select %p43, 0, %s42
      %s45 = sadd.s32 1, %s29
      %s46 = scalar_select %p43, %s45, %s29
      %p47 = scmp.ge.s32.totalorder %s46, 2
      %s48 = scalar_select %p47, 0, %s46
      %s49 = ssub.s32 %s29, %s48
      %s50 = ssub.s32 %s31, %s40
      %s51 = sor.u32 %s49, %s50
      %p52 = scmp.eq.s32.totalorder %s51, 0
      %s54 = sadd.s32 %s53, 1
      %s55 = scalar_select %p52, %s53, %s54
      %p58 = pneg %p52
      %p59 = scmp.eq.s32.totalorder %s22, 3
      %p60 = por %p58, %p59
      %p61 = scmp.ne.s32.totalorder %s53, %s56
      %p62 = scmp.eq.s32.totalorder %s22, 0
      %p63 = por %p61, %p62
      %p64 = scmp.ne.s32.totalorder %s53, %s56
      %p65 = scmp.eq.s32.totalorder %s27, 3
      %p66 = por %p64, %p65
      %p67 = scmp.ne.s32.totalorder %s56, %s57
      %p68 = scmp.eq.s32.totalorder %s27, 0
      %p69 = por %p67, %p68
      %p70 = scmp.ne.s32.totalorder %s56, %s57
      %p71 = scmp.eq.s32.totalorder %s28, 3
      %p72 = por %p70, %p71
      %p74 = scmp.ne.s32.totalorder %s57, %s73
      %p75 = scmp.eq.s32.totalorder %s28, 0
      %p76 = por %p74, %p75
      %s77 = ssub.s32 %s29, %s48
      %p78 = scmp.eq.s32.totalorder %s77, 0
      %s80 = sadd.s32 %s79, 1
      %s81 = scalar_select %p78, %s79, %s80
      %p84 = pneg %p78
      %p85 = scmp.eq.s32.totalorder %s22, 3
      %p86 = por %p84, %p85
      %p87 = scmp.ne.s32.totalorder %s79, %s82
      %p88 = scmp.eq.s32.totalorder %s22, 0
      %p89 = por %p87, %p88
      %p90 = scmp.ne.s32.totalorder %s79, %s82
      %p91 = scmp.eq.s32.totalorder %s27, 3
      %p92 = por %p90, %p91
      %p93 = scmp.ne.s32.totalorder %s82, %s83
      %p94 = scmp.eq.s32.totalorder %s27, 0
      %p95 = por %p93, %p94
      %p96 = scmp.ne.s32.totalorder %s82, %s83
      %p97 = scmp.eq.s32.totalorder %s28, 3
      %p98 = por %p96, %p97
      %p100 = scmp.ne.s32.totalorder %s83, %s99
      %p101 = scmp.eq.s32.totalorder %s28, 0
      %p102 = por %p100, %p101
      %s103 = ssub.s32 %s29, %s48
      %p104 = scmp.eq.s32.totalorder %s103, 0
      %s106 = sadd.s32 %s105, 1
      %s107 = scalar_select %p104, %s105, %s106
      %p110 = pneg %p104
      %p111 = scmp.eq.s32.totalorder %s22, 3
      %p112 = por %p110, %p111
      %p113 = scmp.ne.s32.totalorder %s105, %s108
      %p114 = scmp.eq.s32.totalorder %s22, 0
      %p115 = por %p113, %p114
      %p116 = scmp.ne.s32.totalorder %s105, %s108
      %p117 = scmp.eq.s32.totalorder %s27, 3
      %p118 = por %p116, %p117
      %p119 = scmp.ne.s32.totalorder %s108, %s109
      %p120 = scmp.eq.s32.totalorder %s27, 0
      %p121 = por %p119, %p120
      %p122 = scmp.ne.s32.totalorder %s108, %s109
      %p123 = scmp.eq.s32.totalorder %s28, 3
      %p124 = por %p122, %p123
      %p126 = scmp.ne.s32.totalorder %s109, %s125
      %p127 = scmp.eq.s32.totalorder %s28, 0
      %p128 = por %p126, %p127
      %p129 = scmp.le.s32.totalorder 1, %s22
      %p130 = scmp.lt.s32.totalorder %s22, 5
      %p131 = pnand %p129, %p130
      %p132 = pneg %p131
      // Predicated region
      $region9: #{tpu_custom_call.1} parent=5 // pred_check
        _
      $region10: #{tpu_custom_call.1} parent=5 // pred_check_branch
        %134 = sbr.rel (%p131) target = $region12
      $region11: #{tpu_custom_call.1} parent=5 // pred_region
        %s135 = ssub.s32 %s22, 1
      $region12: #{tpu_custom_call.1} parent=5 // pred_fallthru
        _
      %p136 = scmp.lt.s32.totalorder %s22, 4
      // Predicated region
      $region13: #{tpu_custom_call.1} parent=5 // pred_check
        %p137 = pneg %p136
      $region14: #{tpu_custom_call.1} parent=5 // pred_check_branch
        %139 = sbr.rel (%p137) target = $region16
      $region15: #{tpu_custom_call.1} parent=5 // pred_region
        // Predicated region
        $region17: #{tpu_custom_call.1} parent=15 // pred_check
          %p140 = pneg %p63
        $region18: #{tpu_custom_call.1} parent=15 // pred_check_branch
          %142 = sbr.rel (%p140) target = $region20
        $region19: #{tpu_custom_call.1} parent=15 // pred_region
          %s143 = sand.u32 %s53, 1
          %s144 = scalar_lea.sflag [#allocation6], %s143
          %s145 = sand.u32 %s53, 1
          %s146 = smul.addr %s145, 64
          %s147 = scalar_lea.vmem [#allocation5], %s146
          %s148 = smul.u32 16, %s31
          %s150 = ssub.s32 1024, 1024
          %151 = vsyncadd %s144, %s150
          %s152 = smul.addr %s29, 16
          %s153 = sadd.s32 %s148, %s152
          %s154 = smul.addr %s153, 64
          %s155 = scalar_lea.hbm %s1, %s154
          %s156 = sshll.u32 %s147, 4
          %s157 = int_to_ptr.vmem [resolvable:$true] %s156
          %162 = dma.hbm_to_vmem [thread:$0]  %s155, 1024, %s157, %s144, 64, 64, 4
        $region20: #{tpu_custom_call.1} parent=15 // pred_fallthru
          _
        // Predicated region
        $region21: #{tpu_custom_call.1} parent=15 // pred_check
          %p163 = pneg %p89
        $region22: #{tpu_custom_call.1} parent=15 // pred_check_branch
          %165 = sbr.rel (%p163) target = $region24
        $region23: #{tpu_custom_call.1} parent=15 // pred_region
          %s166 = sand.u32 %s79, 1
          %s167 = scalar_lea.sflag [#allocation9], %s166
          %s168 = sand.u32 %s79, 1
          %s169 = smul.addr %s168, 128
          %s170 = scalar_lea.vmem [#allocation8], %s169
          %s172 = ssub.s32 2048, 2048
          %173 = vsyncadd %s167, %s172
          %s174 = smul.addr %s29, 16
          %s175 = smul.addr %s174, 128
          %s176 = scalar_lea.hbm %s2, %s175
          %s177 = sshll.u32 %s170, 4
          %s178 = int_to_ptr.vmem [resolvable:$true] %s177
          %183 = dma.hbm_to_vmem [thread:$0]  %s176, 2048, %s178, %s167, 128, 128, 8
        $region24: #{tpu_custom_call.1} parent=15 // pred_fallthru
          _
      $region16: #{tpu_custom_call.1} parent=5 // pred_fallthru
        _
      %p184 = scmp.le.s32.totalorder 1, %s22
      %p185 = scmp.lt.s32.totalorder %s22, 5
      %p186 = pnand %p184, %p185
      %p187 = pneg %p186
      // Predicated region
      $region25: #{tpu_custom_call.1} parent=5 // pred_check
        _
      $region26: #{tpu_custom_call.1} parent=5 // pred_check_branch
        %189 = sbr.rel (%p186) target = $region28
      $region27: #{tpu_custom_call.1} parent=5 // pred_region
        %s190 = ssub.s32 %s22, 1
        %s191 = sand.u32 %s56, 1
        %s192 = scalar_lea.sflag [#allocation6], %s191
        %s193 = sand.u32 %s56, 1
        %s194 = smul.addr %s193, 64
        %s195 = scalar_lea.vmem [#allocation5], %s194
        // Predicated region
        $region29: #{tpu_custom_call.1} parent=27 // pred_check
          %p196 = pneg %p69
        $region30: #{tpu_custom_call.1} parent=27 // pred_check_branch
          %198 = sbr.rel (%p196) target = $region32
        $region31: #{tpu_custom_call.1} parent=27 // pred_region
          %199 = dma.done %s192, 1024
        $region32: #{tpu_custom_call.1} parent=27 // pred_fallthru
          _
        %s200 = sand.u32 %s82, 1
        %s201 = scalar_lea.sflag [#allocation9], %s200
        %s202 = sand.u32 %s82, 1
        %s203 = smul.addr %s202, 128
        %s204 = scalar_lea.vmem [#allocation8], %s203
        // Predicated region
        $region33: #{tpu_custom_call.1} parent=27 // pred_check
          %p205 = pneg %p95
        $region34: #{tpu_custom_call.1} parent=27 // pred_check_branch
          %207 = sbr.rel (%p205) target = $region36
        $region35: #{tpu_custom_call.1} parent=27 // pred_region
          %208 = dma.done %s201, 2048
        $region36: #{tpu_custom_call.1} parent=27 // pred_fallthru
          _
        %s209 = sand.u32 %s56, 1
        %s210 = scalar_lea.sflag [#allocation6], %s209
        %s211 = sand.u32 %s56, 1
        %s212 = smul.addr %s211, 64
        %s213 = scalar_lea.vmem [#allocation5], %s212
        %p214 = pneg %p69
        %p215 = pneg %p66
        %s216 = sand.u32 %s82, 1
        %s217 = scalar_lea.sflag [#allocation9], %s216
        %s218 = sand.u32 %s82, 1
        %s219 = smul.addr %s218, 128
        %s220 = scalar_lea.vmem [#allocation8], %s219
        %p221 = pneg %p95
        %p222 = pneg %p92
        %p223 = pneg %p121
        %p224 = pneg %p118
        %s225 = sand.u32 %s108, 1
        %s226 = scalar_lea.sflag [#allocation7], %s225
        %s227 = sand.u32 %s108, 1
        %s228 = smul.addr %s227, 128
        %s229 = scalar_lea.vmem [#allocation10], %s228
        %s230 = smul.u32 16, %s34
        %s231 = smul.u32 %s34, 128
        %s232 = sadd.s32 %s33, 1
        %p233 = scmp.lt.s32.totalorder %s232, 0
        %s234 = ssub.s32 0, %s232
        %s235 = scalar_select %p233, %s234, %s232
        %s236 = sand.u32 %s235, 1
        %s237 = ssub.s32 0, %s236
        %s238 = scalar_select %p233, %s237, %s236
        %p239 = scmp.ne.s32.totalorder %s238, 0
        %p240 = scmp.lt.s32.totalorder %s238, 0
        %p241 = pnand %p240, %p239
        %p242 = pneg %p241
        %s243 = sadd.s32 %s238, 2
        %s244 = scalar_select %p242, %s243, %s238
        %p245 = scmp.lt.s32.totalorder %s33, 0
        %s246 = ssub.s32 0, %s33
        %s247 = scalar_select %p245, %s246, %s33
        %s248 = sand.u32 %s247, 1
        %s249 = ssub.s32 0, %s248
        %s250 = scalar_select %p245, %s249, %s248
        %p251 = scmp.ne.s32.totalorder %s250, 0
        %p252 = scmp.lt.s32.totalorder %s250, 0
        %p253 = pnand %p252, %p251
        %p254 = pneg %p253
        %s255 = sadd.s32 %s250, 2
        %s256 = scalar_select %p254, %s255, %s250
        %v257 = vld [vmem:[%s195] sm:$0xf]
        %v258 = vld [vmem:[%s195 + $0x4] sm:$0xf]
        %v259 = vld [vmem:[%s195 + $0x8] sm:$0xf]
        %v260 = vld [vmem:[%s195 + $0xc] sm:$0xf]
        %v261 = vld [vmem:[%s195 + $0x10] sm:$0xf]
        %v262 = vld [vmem:[%s195 + $0x14] sm:$0xf]
        %v263 = vld [vmem:[%s195 + $0x18] sm:$0xf]
        %v264 = vld [vmem:[%s195 + $0x1c] sm:$0xf]
        %v265 = vld [vmem:[%s195 + $0x20] sm:$0xf]
        %v266 = vld [vmem:[%s195 + $0x24] sm:$0xf]
        %v267 = vld [vmem:[%s195 + $0x28] sm:$0xf]
        %v268 = vld [vmem:[%s195 + $0x2c] sm:$0xf]
        %v269 = vld [vmem:[%s195 + $0x30] sm:$0xf]
        %v270 = vld [vmem:[%s195 + $0x34] sm:$0xf]
        %v271 = vld [vmem:[%s195 + $0x38] sm:$0xf]
        %v272 = vld [vmem:[%s195 + $0x3c] sm:$0xf]
        %v273 = vunpack.c.l.bf16 %v257
        %v274 = vunpack.c.l.bf16 %v258
        %v275 = vunpack.c.l.bf16 %v259
        %v276 = vunpack.c.l.bf16 %v260
        %v277 = vunpack.c.l.bf16 %v261
        %v278 = vunpack.c.l.bf16 %v262
        %v279 = vunpack.c.l.bf16 %v263
        %v280 = vunpack.c.l.bf16 %v264
        %v281 = vunpack.c.l.bf16 %v265
        %v282 = vunpack.c.l.bf16 %v266
        %v283 = vunpack.c.l.bf16 %v267
        %v284 = vunpack.c.l.bf16 %v268
        %v285 = vunpack.c.l.bf16 %v269
        %v286 = vunpack.c.l.bf16 %v270
        %v287 = vunpack.c.l.bf16 %v271
        %v288 = vunpack.c.l.bf16 %v272
        %s289 = sshra.s32 %s232, 7
        %s290 = sand.u32 %s232, 127
        %s291 = sadd.s32 %s289, %s32
        %s292 = smul.u32 %s291, 128
        %s293 = sshra.s32 %s232, 7
        %s294 = sand.u32 %s232, 127
        %s295 = sadd.s32 %s292, %s294
        %s296 = sld [smem:[#allocation4 + %s295]]
        %p297 = scmp.eq.s32.totalorder %s33, 0
        // Predicated region
        $region37: #{tpu_custom_call.1} parent=27 // pred_check
          %p298 = pneg %p297
        $region38: #{tpu_custom_call.1} parent=27 // pred_check_branch
          %300 = sbr.rel (%p298) target = $region40
        $region39: #{tpu_custom_call.1} parent=27 // pred_region
          %s301 = smul.u32 %s32, 128
          %s302 = sld [smem:[#allocation4 + %s301]]
          %s303 = scalar_lea.vmem %s204, %s231 [#allocation8]
          %v304 = vld [vmem:[%s303] sm:$0xff]
          %v305 = vld [vmem:[%s303 + $0x8] sm:$0xff]
          %v306 = vld [vmem:[%s303 + $0x10] sm:$0xff]
          %v307 = vld [vmem:[%s303 + $0x18] sm:$0xff]
          %v308 = vld [vmem:[%s303 + $0x20] sm:$0xff]
          %v309 = vld [vmem:[%s303 + $0x28] sm:$0xff]
          %v310 = vld [vmem:[%s303 + $0x30] sm:$0xff]
          %v311 = vld [vmem:[%s303 + $0x38] sm:$0xff]
          %v312 = vld [vmem:[%s303 + $0x40] sm:$0xff]
          %v313 = vld [vmem:[%s303 + $0x48] sm:$0xff]
          %v314 = vld [vmem:[%s303 + $0x50] sm:$0xff]
          %v315 = vld [vmem:[%s303 + $0x58] sm:$0xff]
          %v316 = vld [vmem:[%s303 + $0x60] sm:$0xff]
          %v317 = vld [vmem:[%s303 + $0x68] sm:$0xff]
          %v318 = vld [vmem:[%s303 + $0x70] sm:$0xff]
          %v319 = vld [vmem:[%s303 + $0x78] sm:$0xff]
          %v320 = vstv %s302
          %v321 = vmul.f32 %v320, %v304
          %v322 = vmul.f32 %v320, %v305
          %v323 = vmul.f32 %v320, %v306
          %v324 = vmul.f32 %v320, %v307
          %v325 = vmul.f32 %v320, %v308
          %v326 = vmul.f32 %v320, %v309
          %v327 = vmul.f32 %v320, %v310
          %v328 = vmul.f32 %v320, %v311
          %v329 = vmul.f32 %v320, %v312
          %v330 = vmul.f32 %v320, %v313
          %v331 = vmul.f32 %v320, %v314
          %v332 = vmul.f32 %v320, %v315
          %v333 = vmul.f32 %v320, %v316
          %v334 = vmul.f32 %v320, %v317
          %v335 = vmul.f32 %v320, %v318
          %v336 = vmul.f32 %v320, %v319
          %s337 = scalar_lea.vmem %s229, %s231 [#allocation10]
          %338 = vst [vmem:[%s337] sm:$0xff] %v321
          %339 = vst [vmem:[%s337 + $0x8] sm:$0xff] %v322
          %340 = vst [vmem:[%s337 + $0x10] sm:$0xff] %v323
          %341 = vst [vmem:[%s337 + $0x18] sm:$0xff] %v324
          %342 = vst [vmem:[%s337 + $0x20] sm:$0xff] %v325
          %343 = vst [vmem:[%s337 + $0x28] sm:$0xff] %v326
          %344 = vst [vmem:[%s337 + $0x30] sm:$0xff] %v327
          %345 = vst [vmem:[%s337 + $0x38] sm:$0xff] %v328
          %346 = vst [vmem:[%s337 + $0x40] sm:$0xff] %v329
          %347 = vst [vmem:[%s337 + $0x48] sm:$0xff] %v330
          %348 = vst [vmem:[%s337 + $0x50] sm:$0xff] %v331
          %349 = vst [vmem:[%s337 + $0x58] sm:$0xff] %v332
          %350 = vst [vmem:[%s337 + $0x60] sm:$0xff] %v333
          %351 = vst [vmem:[%s337 + $0x68] sm:$0xff] %v334
          %352 = vst [vmem:[%s337 + $0x70] sm:$0xff] %v335
          %353 = vst [vmem:[%s337 + $0x78] sm:$0xff] %v336
          %v354 = vld [vmem:[%s204] sm:$0xff]
          %v355 = vld [vmem:[%s204 + $0x8] sm:$0xff]
          %v356 = vld [vmem:[%s204 + $0x10] sm:$0xff]
          %v357 = vld [vmem:[%s204 + $0x18] sm:$0xff]
          %v358 = vld [vmem:[%s204 + $0x20] sm:$0xff]
          %v359 = vld [vmem:[%s204 + $0x28] sm:$0xff]
          %v360 = vld [vmem:[%s204 + $0x30] sm:$0xff]
          %v361 = vld [vmem:[%s204 + $0x38] sm:$0xff]
          %v362 = vld [vmem:[%s204 + $0x40] sm:$0xff]
          %v363 = vld [vmem:[%s204 + $0x48] sm:$0xff]
          %v364 = vld [vmem:[%s204 + $0x50] sm:$0xff]
          %v365 = vld [vmem:[%s204 + $0x58] sm:$0xff]
          %v366 = vld [vmem:[%s204 + $0x60] sm:$0xff]
          %v367 = vld [vmem:[%s204 + $0x68] sm:$0xff]
          %v368 = vld [vmem:[%s204 + $0x70] sm:$0xff]
          %v369 = vld [vmem:[%s204 + $0x78] sm:$0xff]
          %370 = vmatprep.subr.mxu0 0.0
          %371 = vmatpush1.msra.mxu0 %v369
          %372 = vmatprep.subr.mxu0 0.0
          %373 = vmatpush1.msra.mxu0 %v368
          %374 = vmatprep.subr.mxu0 0.0
          %375 = vmatpush1.msra.mxu0 %v367
          %376 = vmatprep.subr.mxu0 0.0
          %377 = vmatpush1.msra.mxu0 %v366
          %378 = vmatprep.subr.mxu0 0.0
          %379 = vmatpush1.msra.mxu0 %v365
          %380 = vmatprep.subr.mxu0 0.0
          %381 = vmatpush1.msra.mxu0 %v364
          %382 = vmatprep.subr.mxu0 0.0
          %383 = vmatpush1.msra.mxu0 %v363
          %384 = vmatprep.subr.mxu0 0.0
          %385 = vmatpush1.msra.mxu0 %v362
          %386 = vmatprep.subr.mxu0 0.0
          %387 = vmatpush1.msra.mxu0 %v361
          %388 = vmatprep.subr.mxu0 0.0
          %389 = vmatpush1.msra.mxu0 %v360
          %390 = vmatprep.subr.mxu0 0.0
          %391 = vmatpush1.msra.mxu0 %v359
          %392 = vmatprep.subr.mxu0 0.0
          %393 = vmatpush1.msra.mxu0 %v358
          %394 = vmatprep.subr.mxu0 0.0
          %395 = vmatpush1.msra.mxu0 %v357
          %396 = vmatprep.subr.mxu0 0.0
          %397 = vmatpush1.msra.mxu0 %v356
          %398 = vmatprep.subr.mxu0 0.0
          %399 = vmatpush1.msra.mxu0 %v355
          %400 = vmatprep.subr.mxu0 0.0
          %401 = vmatpush1.msra.mxu0 %v354
          %402 = vmatprep.subr.mxu0 0.0
          %403 = vmatpush2.msra.mxu0 0.0
          %404 = vmatprep.subr.mxu0 0.0
          %405 = vmatpush2.msra.mxu0 0.0
          %406 = vmatprep.subr.mxu0 0.0
          %407 = vmatpush2.msra.mxu0 0.0
          %408 = vmatprep.subr.mxu0 0.0
          %409 = vmatpush2.msra.mxu0 0.0
          %410 = vmatprep.subr.mxu0 0.0
          %411 = vmatpush2.msra.mxu0 0.0
          %412 = vmatprep.subr.mxu0 0.0
          %413 = vmatpush2.msra.mxu0 0.0
          %414 = vmatprep.subr.mxu0 0.0
          %415 = vmatpush2.msra.mxu0 0.0
          %416 = vmatprep.subr.mxu0 0.0
          %417 = vmatpush2.msra.mxu0 0.0
          %418 = vmatprep.subr.mxu0 0.0
          %419 = vmatpush2.msra.mxu0 0.0
          %420 = vmatprep.subr.mxu0 0.0
          %421 = vmatpush2.msra.mxu0 0.0
          %422 = vmatprep.subr.mxu0 0.0
          %423 = vmatpush2.msra.mxu0 0.0
          %424 = vmatprep.subr.mxu0 0.0
          %425 = vmatpush2.msra.mxu0 0.0
          %426 = vmatprep.subr.mxu0 0.0
          %427 = vmatpush2.msra.mxu0 0.0
          %428 = vmatprep.subr.mxu0 0.0
          %429 = vmatpush2.msra.mxu0 0.0
          %430 = vmatprep.subr.mxu0 0.0
          %431 = vmatpush2.msra.mxu0 0.0
          %432 = vmatprep.subr.mxu0 0.0
          %433 = vmatpush2.msra.mxu0 0.0
          %434 = vmatprep.mubr.f32.mxu0 0.0
          %435 = vmatmul.mubr.f32.gmra.mxu0 %v273
          %v436 = vpop.f32.mrf.mxu0
          %v437 = vadd.f32 0.0, %v436
          %v438 = vpop.f32.mrf.mxu0
          %439 = vmatprep.mubr.f32.mxu0 0.0
          %440 = vmatmul.mubr.f32.gmra.mxu0 %v274
          %v441 = vpop.f32.mrf.mxu0
          %v442 = vadd.f32 0.0, %v441
          %v443 = vpop.f32.mrf.mxu0
          %444 = vmatprep.mubr.f32.mxu0 0.0
          %445 = vmatmul.mubr.f32.gmra.mxu0 %v275
          %v446 = vpop.f32.mrf.mxu0
          %v447 = vadd.f32 0.0, %v446
          %v448 = vpop.f32.mrf.mxu0
          %449 = vmatprep.mubr.f32.mxu0 0.0
          %450 = vmatmul.mubr.f32.gmra.mxu0 %v276
          %v451 = vpop.f32.mrf.mxu0
          %v452 = vadd.f32 0.0, %v451
          %v453 = vpop.f32.mrf.mxu0
          %454 = vmatprep.mubr.f32.mxu0 0.0
          %455 = vmatmul.mubr.f32.gmra.mxu0 %v277
          %v456 = vpop.f32.mrf.mxu0
          %v457 = vadd.f32 0.0, %v456
          %v458 = vpop.f32.mrf.mxu0
          %459 = vmatprep.mubr.f32.mxu0 0.0
          %460 = vmatmul.mubr.f32.gmra.mxu0 %v278
          %v461 = vpop.f32.mrf.mxu0
          %v462 = vadd.f32 0.0, %v461
          %v463 = vpop.f32.mrf.mxu0
          %464 = vmatprep.mubr.f32.mxu0 0.0
          %465 = vmatmul.mubr.f32.gmra.mxu0 %v279
          %v466 = vpop.f32.mrf.mxu0
          %v467 = vadd.f32 0.0, %v466
          %v468 = vpop.f32.mrf.mxu0
          %469 = vmatprep.mubr.f32.mxu0 0.0
          %470 = vmatmul.mubr.f32.gmra.mxu0 %v280
          %v471 = vpop.f32.mrf.mxu0
          %v472 = vadd.f32 0.0, %v471
          %v473 = vpop.f32.mrf.mxu0
          %474 = vmatprep.mubr.f32.mxu0 0.0
          %475 = vmatmul.mubr.f32.gmra.mxu0 %v281
          %v476 = vpop.f32.mrf.mxu0
          %v477 = vadd.f32 0.0, %v476
          %v478 = vpop.f32.mrf.mxu0
          %479 = vmatprep.mubr.f32.mxu0 0.0
          %480 = vmatmul.mubr.f32.gmra.mxu0 %v282
          %v481 = vpop.f32.mrf.mxu0
          %v482 = vadd.f32 0.0, %v481
          %v483 = vpop.f32.mrf.mxu0
          %484 = vmatprep.mubr.f32.mxu0 0.0
          %485 = vmatmul.mubr.f32.gmra.mxu0 %v283
          %v486 = vpop.f32.mrf.mxu0
          %v487 = vadd.f32 0.0, %v486
          %v488 = vpop.f32.mrf.mxu0
          %489 = vmatprep.mubr.f32.mxu0 0.0
          %490 = vmatmul.mubr.f32.gmra.mxu0 %v284
          %v491 = vpop.f32.mrf.mxu0
          %v492 = vadd.f32 0.0, %v491
          %v493 = vpop.f32.mrf.mxu0
          %494 = vmatprep.mubr.f32.mxu0 0.0
          %495 = vmatmul.mubr.f32.gmra.mxu0 %v285
          %v496 = vpop.f32.mrf.mxu0
          %v497 = vadd.f32 0.0, %v496
          %v498 = vpop.f32.mrf.mxu0
          %499 = vmatprep.mubr.f32.mxu0 0.0
          %500 = vmatmul.mubr.f32.gmra.mxu0 %v286
          %v501 = vpop.f32.mrf.mxu0
          %v502 = vadd.f32 0.0, %v501
          %v503 = vpop.f32.mrf.mxu0
          %504 = vmatprep.mubr.f32.mxu0 0.0
          %505 = vmatmul.mubr.f32.gmra.mxu0 %v287
          %v506 = vpop.f32.mrf.mxu0
          %v507 = vadd.f32 0.0, %v506
          %v508 = vpop.f32.mrf.mxu0
          %509 = vmatprep.mubr.f32.mxu0 0.0
          %510 = vmatmul.mubr.f32.gmra.mxu0 %v288
          %v511 = vpop.f32.mrf.mxu0
          %v512 = vadd.f32 0.0, %v511
          %v513 = vpop.f32.mrf.mxu0
          %514 = vdwg.mxu0
          %s515 = smul.u32 %s256, 128
          %s516 = sadd.s32 %s231, %s515
          %s517 = scalar_lea.vmem [#allocation2], %s516
          %518 = vst [vmem:[%s517] sm:$0xff] %v437
          %519 = vst [vmem:[%s517 + $0x8] sm:$0xff] %v442
          %520 = vst [vmem:[%s517 + $0x10] sm:$0xff] %v447
          %521 = vst [vmem:[%s517 + $0x18] sm:$0xff] %v452
          %522 = vst [vmem:[%s517 + $0x20] sm:$0xff] %v457
          %523 = vst [vmem:[%s517 + $0x28] sm:$0xff] %v462
          %524 = vst [vmem:[%s517 + $0x30] sm:$0xff] %v467
          %525 = vst [vmem:[%s517 + $0x38] sm:$0xff] %v472
          %526 = vst [vmem:[%s517 + $0x40] sm:$0xff] %v477
          %527 = vst [vmem:[%s517 + $0x48] sm:$0xff] %v482
          %528 = vst [vmem:[%s517 + $0x50] sm:$0xff] %v487
          %529 = vst [vmem:[%s517 + $0x58] sm:$0xff] %v492
          %530 = vst [vmem:[%s517 + $0x60] sm:$0xff] %v497
          %531 = vst [vmem:[%s517 + $0x68] sm:$0xff] %v502
          %532 = vst [vmem:[%s517 + $0x70] sm:$0xff] %v507
          %533 = vst [vmem:[%s517 + $0x78] sm:$0xff] %v512
          %v534 = vld [vmem:[%s337] sm:$0xff]
          %v535 = vld [vmem:[%s337 + $0x8] sm:$0xff]
          %v536 = vld [vmem:[%s337 + $0x10] sm:$0xff]
          %v537 = vld [vmem:[%s337 + $0x18] sm:$0xff]
          %v538 = vld [vmem:[%s337 + $0x20] sm:$0xff]
          %v539 = vld [vmem:[%s337 + $0x28] sm:$0xff]
          %v540 = vld [vmem:[%s337 + $0x30] sm:$0xff]
          %v541 = vld [vmem:[%s337 + $0x38] sm:$0xff]
          %v542 = vld [vmem:[%s337 + $0x40] sm:$0xff]
          %v543 = vld [vmem:[%s337 + $0x48] sm:$0xff]
          %v544 = vld [vmem:[%s337 + $0x50] sm:$0xff]
          %v545 = vld [vmem:[%s337 + $0x58] sm:$0xff]
          %v546 = vld [vmem:[%s337 + $0x60] sm:$0xff]
          %v547 = vld [vmem:[%s337 + $0x68] sm:$0xff]
          %v548 = vld [vmem:[%s337 + $0x70] sm:$0xff]
          %v549 = vld [vmem:[%s337 + $0x78] sm:$0xff]
          %v550 = vstv %s296
          %v551 = vmul.f32 %v550, %v437
          %v552 = vmul.f32 %v550, %v442
          %v553 = vmul.f32 %v550, %v447
          %v554 = vmul.f32 %v550, %v452
          %v555 = vmul.f32 %v550, %v457
          %v556 = vmul.f32 %v550, %v462
          %v557 = vmul.f32 %v550, %v467
          %v558 = vmul.f32 %v550, %v472
          %v559 = vmul.f32 %v550, %v477
          %v560 = vmul.f32 %v550, %v482
          %v561 = vmul.f32 %v550, %v487
          %v562 = vmul.f32 %v550, %v492
          %v563 = vmul.f32 %v550, %v497
          %v564 = vmul.f32 %v550, %v502
          %v565 = vmul.f32 %v550, %v507
          %v566 = vmul.f32 %v550, %v512
          %v567 = vadd.f32 %v534, %v551
          %v568 = vadd.f32 %v535, %v552
          %v569 = vadd.f32 %v536, %v553
          %v570 = vadd.f32 %v537, %v554
          %v571 = vadd.f32 %v538, %v555
          %v572 = vadd.f32 %v539, %v556
          %v573 = vadd.f32 %v540, %v557
          %v574 = vadd.f32 %v541, %v558
          %v575 = vadd.f32 %v542, %v559
          %v576 = vadd.f32 %v543, %v560
          %v577 = vadd.f32 %v544, %v561
          %v578 = vadd.f32 %v545, %v562
          %v579 = vadd.f32 %v546, %v563
          %v580 = vadd.f32 %v547, %v564
          %v581 = vadd.f32 %v548, %v565
          %v582 = vadd.f32 %v549, %v566
          %583 = vst [vmem:[%s337] sm:$0xff] %v567
          %584 = vst [vmem:[%s337 + $0x8] sm:$0xff] %v568
          %585 = vst [vmem:[%s337 + $0x10] sm:$0xff] %v569
          %586 = vst [vmem:[%s337 + $0x18] sm:$0xff] %v570
          %587 = vst [vmem:[%s337 + $0x20] sm:$0xff] %v571
          %588 = vst [vmem:[%s337 + $0x28] sm:$0xff] %v572
          %589 = vst [vmem:[%s337 + $0x30] sm:$0xff] %v573
          %590 = vst [vmem:[%s337 + $0x38] sm:$0xff] %v574
          %591 = vst [vmem:[%s337 + $0x40] sm:$0xff] %v575
          %592 = vst [vmem:[%s337 + $0x48] sm:$0xff] %v576
          %593 = vst [vmem:[%s337 + $0x50] sm:$0xff] %v577
          %594 = vst [vmem:[%s337 + $0x58] sm:$0xff] %v578
          %595 = vst [vmem:[%s337 + $0x60] sm:$0xff] %v579
          %596 = vst [vmem:[%s337 + $0x68] sm:$0xff] %v580
          %597 = vst [vmem:[%s337 + $0x70] sm:$0xff] %v581
          %598 = vst [vmem:[%s337 + $0x78] sm:$0xff] %v582
        $region40: #{tpu_custom_call.1} parent=27 // pred_fallthru
          _
        %p599 = scmp.gt.s32.totalorder %s33, 0
        // Predicated region
        $region41: #{tpu_custom_call.1} parent=27 // pred_check
          %p600 = pneg %p599
        $region42: #{tpu_custom_call.1} parent=27 // pred_check_branch
          %602 = sbr.rel (%p600) target = $region44
        $region43: #{tpu_custom_call.1} parent=27 // pred_region
          %s603 = smul.u32 %s244, 128
          %s604 = scalar_lea.vmem [#allocation2], %s603
          %v605 = vld [vmem:[%s604] sm:$0xff]
          %v606 = vld [vmem:[%s604 + $0x8] sm:$0xff]
          %v607 = vld [vmem:[%s604 + $0x10] sm:$0xff]
          %v608 = vld [vmem:[%s604 + $0x18] sm:$0xff]
          %v609 = vld [vmem:[%s604 + $0x20] sm:$0xff]
          %v610 = vld [vmem:[%s604 + $0x28] sm:$0xff]
          %v611 = vld [vmem:[%s604 + $0x30] sm:$0xff]
          %v612 = vld [vmem:[%s604 + $0x38] sm:$0xff]
          %v613 = vld [vmem:[%s604 + $0x40] sm:$0xff]
          %v614 = vld [vmem:[%s604 + $0x48] sm:$0xff]
          %v615 = vld [vmem:[%s604 + $0x50] sm:$0xff]
          %v616 = vld [vmem:[%s604 + $0x58] sm:$0xff]
          %v617 = vld [vmem:[%s604 + $0x60] sm:$0xff]
          %v618 = vld [vmem:[%s604 + $0x68] sm:$0xff]
          %v619 = vld [vmem:[%s604 + $0x70] sm:$0xff]
          %v620 = vld [vmem:[%s604 + $0x78] sm:$0xff]
          %621 = vmatprep.subr.mxu0 0.0
          %622 = vmatpush1.msra.mxu0 %v620
          %623 = vmatprep.subr.mxu0 0.0
          %624 = vmatpush1.msra.mxu0 %v619
          %625 = vmatprep.subr.mxu0 0.0
          %626 = vmatpush1.msra.mxu0 %v618
          %627 = vmatprep.subr.mxu0 0.0
          %628 = vmatpush1.msra.mxu0 %v617
          %629 = vmatprep.subr.mxu0 0.0
          %630 = vmatpush1.msra.mxu0 %v616
          %631 = vmatprep.subr.mxu0 0.0
          %632 = vmatpush1.msra.mxu0 %v615
          %633 = vmatprep.subr.mxu0 0.0
          %634 = vmatpush1.msra.mxu0 %v614
          %635 = vmatprep.subr.mxu0 0.0
          %636 = vmatpush1.msra.mxu0 %v613
          %637 = vmatprep.subr.mxu0 0.0
          %638 = vmatpush1.msra.mxu0 %v612
          %639 = vmatprep.subr.mxu0 0.0
          %640 = vmatpush1.msra.mxu0 %v611
          %641 = vmatprep.subr.mxu0 0.0
          %642 = vmatpush1.msra.mxu0 %v610
          %643 = vmatprep.subr.mxu0 0.0
          %644 = vmatpush1.msra.mxu0 %v609
          %645 = vmatprep.subr.mxu0 0.0
          %646 = vmatpush1.msra.mxu0 %v608
          %647 = vmatprep.subr.mxu0 0.0
          %648 = vmatpush1.msra.mxu0 %v607
          %649 = vmatprep.subr.mxu0 0.0
          %650 = vmatpush1.msra.mxu0 %v606
          %651 = vmatprep.subr.mxu0 0.0
          %652 = vmatpush1.msra.mxu0 %v605
          %653 = vmatprep.subr.mxu0 0.0
          %654 = vmatpush2.msra.mxu0 0.0
          %655 = vmatprep.subr.mxu0 0.0
          %656 = vmatpush2.msra.mxu0 0.0
          %657 = vmatprep.subr.mxu0 0.0
          %658 = vmatpush2.msra.mxu0 0.0
          %659 = vmatprep.subr.mxu0 0.0
          %660 = vmatpush2.msra.mxu0 0.0
          %661 = vmatprep.subr.mxu0 0.0
          %662 = vmatpush2.msra.mxu0 0.0
          %663 = vmatprep.subr.mxu0 0.0
          %664 = vmatpush2.msra.mxu0 0.0
          %665 = vmatprep.subr.mxu0 0.0
          %666 = vmatpush2.msra.mxu0 0.0
          %667 = vmatprep.subr.mxu0 0.0
          %668 = vmatpush2.msra.mxu0 0.0
          %669 = vmatprep.subr.mxu0 0.0
          %670 = vmatpush2.msra.mxu0 0.0
          %671 = vmatprep.subr.mxu0 0.0
          %672 = vmatpush2.msra.mxu0 0.0
          %673 = vmatprep.subr.mxu0 0.0
          %674 = vmatpush2.msra.mxu0 0.0
          %675 = vmatprep.subr.mxu0 0.0
          %676 = vmatpush2.msra.mxu0 0.0
          %677 = vmatprep.subr.mxu0 0.0
          %678 = vmatpush2.msra.mxu0 0.0
          %679 = vmatprep.subr.mxu0 0.0
          %680 = vmatpush2.msra.mxu0 0.0
          %681 = vmatprep.subr.mxu0 0.0
          %682 = vmatpush2.msra.mxu0 0.0
          %683 = vmatprep.subr.mxu0 0.0
          %684 = vmatpush2.msra.mxu0 0.0
          %685 = vmatprep.mubr.f32.mxu0 0.0
          %686 = vmatmul.mubr.f32.gmra.mxu0 %v273
          %v687 = vpop.f32.mrf.mxu0
          %v688 = vadd.f32 0.0, %v687
          %v689 = vpop.f32.mrf.mxu0
          %690 = vmatprep.mubr.f32.mxu0 0.0
          %691 = vmatmul.mubr.f32.gmra.mxu0 %v274
          %v692 = vpop.f32.mrf.mxu0
          %v693 = vadd.f32 0.0, %v692
          %v694 = vpop.f32.mrf.mxu0
          %695 = vmatprep.mubr.f32.mxu0 0.0
          %696 = vmatmul.mubr.f32.gmra.mxu0 %v275
          %v697 = vpop.f32.mrf.mxu0
          %v698 = vadd.f32 0.0, %v697
          %v699 = vpop.f32.mrf.mxu0
          %700 = vmatprep.mubr.f32.mxu0 0.0
          %701 = vmatmul.mubr.f32.gmra.mxu0 %v276
          %v702 = vpop.f32.mrf.mxu0
          %v703 = vadd.f32 0.0, %v702
          %v704 = vpop.f32.mrf.mxu0
          %705 = vmatprep.mubr.f32.mxu0 0.0
          %706 = vmatmul.mubr.f32.gmra.mxu0 %v277
          %v707 = vpop.f32.mrf.mxu0
          %v708 = vadd.f32 0.0, %v707
          %v709 = vpop.f32.mrf.mxu0
          %710 = vmatprep.mubr.f32.mxu0 0.0
          %711 = vmatmul.mubr.f32.gmra.mxu0 %v278
          %v712 = vpop.f32.mrf.mxu0
          %v713 = vadd.f32 0.0, %v712
          %v714 = vpop.f32.mrf.mxu0
          %715 = vmatprep.mubr.f32.mxu0 0.0
          %716 = vmatmul.mubr.f32.gmra.mxu0 %v279
          %v717 = vpop.f32.mrf.mxu0
          %v718 = vadd.f32 0.0, %v717
          %v719 = vpop.f32.mrf.mxu0
          %720 = vmatprep.mubr.f32.mxu0 0.0
          %721 = vmatmul.mubr.f32.gmra.mxu0 %v280
          %v722 = vpop.f32.mrf.mxu0
          %v723 = vadd.f32 0.0, %v722
          %v724 = vpop.f32.mrf.mxu0
          %725 = vmatprep.mubr.f32.mxu0 0.0
          %726 = vmatmul.mubr.f32.gmra.mxu0 %v281
          %v727 = vpop.f32.mrf.mxu0
          %v728 = vadd.f32 0.0, %v727
          %v729 = vpop.f32.mrf.mxu0
          %730 = vmatprep.mubr.f32.mxu0 0.0
          %731 = vmatmul.mubr.f32.gmra.mxu0 %v282
          %v732 = vpop.f32.mrf.mxu0
          %v733 = vadd.f32 0.0, %v732
          %v734 = vpop.f32.mrf.mxu0
          %735 = vmatprep.mubr.f32.mxu0 0.0
          %736 = vmatmul.mubr.f32.gmra.mxu0 %v283
          %v737 = vpop.f32.mrf.mxu0
          %v738 = vadd.f32 0.0, %v737
          %v739 = vpop.f32.mrf.mxu0
          %740 = vmatprep.mubr.f32.mxu0 0.0
          %741 = vmatmul.mubr.f32.gmra.mxu0 %v284
          %v742 = vpop.f32.mrf.mxu0
          %v743 = vadd.f32 0.0, %v742
          %v744 = vpop.f32.mrf.mxu0
          %745 = vmatprep.mubr.f32.mxu0 0.0
          %746 = vmatmul.mubr.f32.gmra.mxu0 %v285
          %v747 = vpop.f32.mrf.mxu0
          %v748 = vadd.f32 0.0, %v747
          %v749 = vpop.f32.mrf.mxu0
          %750 = vmatprep.mubr.f32.mxu0 0.0
          %751 = vmatmul.mubr.f32.gmra.mxu0 %v286
          %v752 = vpop.f32.mrf.mxu0
          %v753 = vadd.f32 0.0, %v752
          %v754 = vpop.f32.mrf.mxu0
          %755 = vmatprep.mubr.f32.mxu0 0.0
          %756 = vmatmul.mubr.f32.gmra.mxu0 %v287
          %v757 = vpop.f32.mrf.mxu0
          %v758 = vadd.f32 0.0, %v757
          %v759 = vpop.f32.mrf.mxu0
          %760 = vmatprep.mubr.f32.mxu0 0.0
          %761 = vmatmul.mubr.f32.gmra.mxu0 %v288
          %v762 = vpop.f32.mrf.mxu0
          %v763 = vadd.f32 0.0, %v762
          %v764 = vpop.f32.mrf.mxu0
          %765 = vdwg.mxu0
          %s766 = smul.u32 %s256, 128
          %s767 = sadd.s32 %s231, %s766
          %s768 = scalar_lea.vmem [#allocation2], %s767
          %769 = vst [vmem:[%s768] sm:$0xff] %v688
          %770 = vst [vmem:[%s768 + $0x8] sm:$0xff] %v693
          %771 = vst [vmem:[%s768 + $0x10] sm:$0xff] %v698
          %772 = vst [vmem:[%s768 + $0x18] sm:$0xff] %v703
          %773 = vst [vmem:[%s768 + $0x20] sm:$0xff] %v708
          %774 = vst [vmem:[%s768 + $0x28] sm:$0xff] %v713
          %775 = vst [vmem:[%s768 + $0x30] sm:$0xff] %v718
          %776 = vst [vmem:[%s768 + $0x38] sm:$0xff] %v723
          %777 = vst [vmem:[%s768 + $0x40] sm:$0xff] %v728
          %778 = vst [vmem:[%s768 + $0x48] sm:$0xff] %v733
          %779 = vst [vmem:[%s768 + $0x50] sm:$0xff] %v738
          %780 = vst [vmem:[%s768 + $0x58] sm:$0xff] %v743
          %781 = vst [vmem:[%s768 + $0x60] sm:$0xff] %v748
          %782 = vst [vmem:[%s768 + $0x68] sm:$0xff] %v753
          %783 = vst [vmem:[%s768 + $0x70] sm:$0xff] %v758
          %784 = vst [vmem:[%s768 + $0x78] sm:$0xff] %v763
          %s785 = scalar_lea.vmem %s229, %s231 [#allocation10]
          %v786 = vld [vmem:[%s785] sm:$0xff]
          %v787 = vld [vmem:[%s785 + $0x8] sm:$0xff]
          %v788 = vld [vmem:[%s785 + $0x10] sm:$0xff]
          %v789 = vld [vmem:[%s785 + $0x18] sm:$0xff]
          %v790 = vld [vmem:[%s785 + $0x20] sm:$0xff]
          %v791 = vld [vmem:[%s785 + $0x28] sm:$0xff]
          %v792 = vld [vmem:[%s785 + $0x30] sm:$0xff]
          %v793 = vld [vmem:[%s785 + $0x38] sm:$0xff]
          %v794 = vld [vmem:[%s785 + $0x40] sm:$0xff]
          %v795 = vld [vmem:[%s785 + $0x48] sm:$0xff]
          %v796 = vld [vmem:[%s785 + $0x50] sm:$0xff]
          %v797 = vld [vmem:[%s785 + $0x58] sm:$0xff]
          %v798 = vld [vmem:[%s785 + $0x60] sm:$0xff]
          %v799 = vld [vmem:[%s785 + $0x68] sm:$0xff]
          %v800 = vld [vmem:[%s785 + $0x70] sm:$0xff]
          %v801 = vld [vmem:[%s785 + $0x78] sm:$0xff]
          %v802 = vstv %s296
          %v803 = vmul.f32 %v802, %v688
          %v804 = vmul.f32 %v802, %v693
          %v805 = vmul.f32 %v802, %v698
          %v806 = vmul.f32 %v802, %v703
          %v807 = vmul.f32 %v802, %v708
          %v808 = vmul.f32 %v802, %v713
          %v809 = vmul.f32 %v802, %v718
          %v810 = vmul.f32 %v802, %v723
          %v811 = vmul.f32 %v802, %v728
          %v812 = vmul.f32 %v802, %v733
          %v813 = vmul.f32 %v802, %v738
          %v814 = vmul.f32 %v802, %v743
          %v815 = vmul.f32 %v802, %v748
          %v816 = vmul.f32 %v802, %v753
          %v817 = vmul.f32 %v802, %v758
          %v818 = vmul.f32 %v802, %v763
          %v819 = vadd.f32 %v786, %v803
          %v820 = vadd.f32 %v787, %v804
          %v821 = vadd.f32 %v788, %v805
          %v822 = vadd.f32 %v789, %v806
          %v823 = vadd.f32 %v790, %v807
          %v824 = vadd.f32 %v791, %v808
          %v825 = vadd.f32 %v792, %v809
          %v826 = vadd.f32 %v793, %v810
          %v827 = vadd.f32 %v794, %v811
          %v828 = vadd.f32 %v795, %v812
          %v829 = vadd.f32 %v796, %v813
          %v830 = vadd.f32 %v797, %v814
          %v831 = vadd.f32 %v798, %v815
          %v832 = vadd.f32 %v799, %v816
          %v833 = vadd.f32 %v800, %v817
          %v834 = vadd.f32 %v801, %v818
          %835 = vst [vmem:[%s785] sm:$0xff] %v819
          %836 = vst [vmem:[%s785 + $0x8] sm:$0xff] %v820
          %837 = vst [vmem:[%s785 + $0x10] sm:$0xff] %v821
          %838 = vst [vmem:[%s785 + $0x18] sm:$0xff] %v822
          %839 = vst [vmem:[%s785 + $0x20] sm:$0xff] %v823
          %840 = vst [vmem:[%s785 + $0x28] sm:$0xff] %v824
          %841 = vst [vmem:[%s785 + $0x30] sm:$0xff] %v825
          %842 = vst [vmem:[%s785 + $0x38] sm:$0xff] %v826
          %843 = vst [vmem:[%s785 + $0x40] sm:$0xff] %v827
          %844 = vst [vmem:[%s785 + $0x48] sm:$0xff] %v828
          %845 = vst [vmem:[%s785 + $0x50] sm:$0xff] %v829
          %846 = vst [vmem:[%s785 + $0x58] sm:$0xff] %v830
          %847 = vst [vmem:[%s785 + $0x60] sm:$0xff] %v831
          %848 = vst [vmem:[%s785 + $0x68] sm:$0xff] %v832
          %849 = vst [vmem:[%s785 + $0x70] sm:$0xff] %v833
          %850 = vst [vmem:[%s785 + $0x78] sm:$0xff] %v834
        $region44: #{tpu_custom_call.1} parent=27 // pred_fallthru
          _
        %s851 = sand.u32 %s108, 1
        %s852 = scalar_lea.sflag [#allocation7], %s851
        %s853 = sand.u32 %s108, 1
        %s854 = smul.addr %s853, 128
        %s855 = scalar_lea.vmem [#allocation10], %s854
        // Predicated region
        $region45: #{tpu_custom_call.1} parent=27 // pred_check
          %p856 = pneg %p118
        $region46: #{tpu_custom_call.1} parent=27 // pred_check_branch
          %858 = sbr.rel (%p856) target = $region48
        $region47: #{tpu_custom_call.1} parent=27 // pred_region
          %s860 = ssub.s32 2048, 2048
          %861 = vsyncadd %s852, %s860
          %s862 = smul.addr %s32, 16
          %s863 = smul.addr %s862, 128
          %s864 = scalar_lea.hbm %s3, %s863
          %s865 = sshll.u32 %s855, 4
          %s866 = int_to_ptr.vmem [resolvable:$true] %s865
          %871 = dma.vmem_to_hbm [thread:$0]  %s866, 2048, %s864, %s852, 128, 128, 8
        $region48: #{tpu_custom_call.1} parent=27 // pred_fallthru
          _
      $region28: #{tpu_custom_call.1} parent=5 // pred_fallthru
        _
      %p872 = scmp.le.s32.totalorder 2, %s22
      // Predicated region
      $region49: #{tpu_custom_call.1} parent=5 // pred_check
        %p873 = pneg %p872
      $region50: #{tpu_custom_call.1} parent=5 // pred_check_branch
        %875 = sbr.rel (%p873) target = $region52
      $region51: #{tpu_custom_call.1} parent=5 // pred_region
        %s876 = ssub.s32 %s22, 2
        // Predicated region
        $region53: #{tpu_custom_call.1} parent=51 // pred_check
          %p877 = pneg %p124
        $region54: #{tpu_custom_call.1} parent=51 // pred_check_branch
          %879 = sbr.rel (%p877) target = $region56
        $region55: #{tpu_custom_call.1} parent=51 // pred_region
          %s880 = sand.u32 %s109, 1
          %s881 = scalar_lea.sflag [#allocation7], %s880
          %s882 = sand.u32 %s109, 1
          %s883 = smul.addr %s882, 128
          %s884 = scalar_lea.vmem [#allocation10], %s883
          %885 = dma.done %s881, 2048
        $region56: #{tpu_custom_call.1} parent=51 // pred_fallthru
          _
      $region52: #{tpu_custom_call.1} parent=5 // pred_fallthru
        _
    $region6: #{tpu_custom_call.1} parent=1 // loop_footer
      %s26 = sadd.s32 1, %s22
    $region7: #{tpu_custom_call.1} parent=1 // loop_footer_branch
      %21 = sbr.rel target = $region3
    $region8: #{tpu_custom_call.1} parent=1 // loop_exit
      _
    %886 = vsyncpa [#allocation6], 1
    %s887 = scalar_lea.sflag [#allocation6], 1
    %888 = vsyncpa %s887, 1
    %889 = vsyncpa [#allocation9], 1
    %s890 = scalar_lea.sflag [#allocation9], 1
    %891 = vsyncpa %s890, 1
    %892 = vsyncpa [#allocation7], 1
    %s893 = scalar_lea.sflag [#allocation7], 1
    %894 = vsyncpa %s893, 1

</llo_original>
